<compile_context>
chip_gen: v7x
topology: tpu7x:2x2x1
jax: 0.10.0
libtpu: 0.0.40
codegen_flags: <defaults>
</compile_context>

<pallas_src>
import jax
import jax.numpy as jnp
from jax import lax
from jax.experimental import pallas as pl
from jax.experimental.pallas import tpu as pltpu


# ---------------------------------------------------------------------------
# Tile-size helpers (VMEM-budget driven, per perf feedback)
# ---------------------------------------------------------------------------
_TARGET_TILE_BYTES = 2 << 20  # ~2 MiB per buffer; x2 double-buffer x #operands


def _pick_row_tile(n_rows, row_bytes, target_bytes=_TARGET_TILE_BYTES, min_steps=8):
    """Row tile: multiple of 8 (or == n_rows when tiny); aims for >= min_steps grid steps."""
    if n_rows <= 8:
        return n_rows
    tm = min(n_rows, max(8, target_bytes // max(row_bytes, 1)))
    tm = min(tm, max(8, pl.cdiv(n_rows, min_steps)))
    return max(8, (tm // 8) * 8)


def _pick_lane_tile(n_lanes, bytes_per_lane, target_bytes=_TARGET_TILE_BYTES, min_steps=2):
    """Lane tile: multiple of 128 (or == n_lanes when tiny), fits the VMEM budget."""
    if n_lanes <= 128:
        return n_lanes
    budget = max(128, (target_bytes // max(bytes_per_lane, 1)) // 128 * 128)
    split = max(128, (pl.cdiv(n_lanes, min_steps) // 128) * 128)
    return min(n_lanes, budget, split)


# ---------------------------------------------------------------------------
# Pallas kernels
# ---------------------------------------------------------------------------
def _biasfree_ln_kernel(x_ref, w_ref, o_ref):
    """BiasFree LayerNorm over channels for a (C, TL) tile (C = full channel dim)."""
    x = x_ref[...].astype(jnp.float32)                   # (C, TL), lane dim = HW chunk
    inv_c = 1.0 / x.shape[0]
    mu = jnp.sum(x, axis=0, keepdims=True) * inv_c       # (1, TL)
    xc = x - mu
    var = jnp.sum(xc * xc, axis=0, keepdims=True) * inv_c
    inv = lax.rsqrt(var + 1e-5)                          # EUP rsqrt, mul instead of divide
    w = w_ref[...].astype(jnp.float32)                   # (C, 1)
    o_ref[...] = (x * inv * w).astype(o_ref.dtype)


def _chan_attn_kernel(q_ref, k_ref, v_ref, t_ref, o_ref):
    """Fused channel attention for one (batch, head): q,k,v are (C_head, HW)."""
    q = q_ref[...].astype(jnp.float32)
    k = k_ref[...].astype(jnp.float32)
    v = v_ref[...].astype(jnp.float32)
    # L2-normalize rows over HW (rsqrt * mul; clamp matches F.normalize eps=1e-12)
    qn = q * lax.rsqrt(jnp.maximum(jnp.sum(q * q, axis=-1, keepdims=True), 1e-24))
    kn = k * lax.rsqrt(jnp.maximum(jnp.sum(k * k, axis=-1, keepdims=True), 1e-24))
    # (C, C) = qn @ kn^T on the MXU
    attn = lax.dot_general(qn, kn, (((1,), (1,)), ((), ())),
                           preferred_element_type=jnp.float32)
    attn = attn * t_ref[pl.program_id(1)]                # per-head temperature from SMEM
    attn = attn - jnp.max(attn, axis=-1, keepdims=True)
    e = jnp.exp(attn)
    p = e / jnp.sum(e, axis=-1, keepdims=True)
    out = jnp.dot(p, v, preferred_element_type=jnp.float32)   # (C, HW)
    o_ref[...] = out.astype(o_ref.dtype)


def _gated_gelu_kernel(x1_ref, x2_ref, o_ref):
    """Fused gelu(x1) * x2 on (tm, L) row tiles."""
    x1 = x1_ref[...].astype(jnp.float32)
    x2 = x2_ref[...].astype(jnp.float32)
    # tanh-approx GELU (EUP tanh); numerically ~1e-3 of the exact erf GELU.
    o_ref[...] = (jax.nn.gelu(x1, approximate=True) * x2).astype(o_ref.dtype)


# ---------------------------------------------------------------------------
# Pallas wrappers
# ---------------------------------------------------------------------------
def _biasfree_ln_pallas(x, weight):
    """x: (B, C, H, W). BiasFree LayerNorm over C (== last dim of to_3d(x))."""
    B, C, H, W = x.shape
    L = H * W
    x3 = x.reshape(B, C, L)                 # free reshape, keeps NCHW memory order
    TL = _pick_lane_tile(L, C * 4)
    grid = (B, pl.cdiv(L, TL))
    w2 = weight.reshape(C, 1).astype(x.dtype)
    out = pl.pallas_call(
        _biasfree_ln_kernel,
        out_shape=jax.ShapeDtypeStruct((B, C, L), x.dtype),
        grid_spec=pltpu.PrefetchScalarGridSpec(
            num_scalar_prefetch=0,
            grid=grid,
            in_specs=[pl.BlockSpec((None, C, TL), lambda b, l: (b, 0, l)),
                      pl.BlockSpec((C, 1), lambda b, l: (0, 0))],
            out_specs=pl.BlockSpec((None, C, TL), lambda b, l: (b, 0, l)),
        ),
        compiler_params=pltpu.CompilerParams(
            dimension_semantics=("parallel", "parallel"),
            vmem_limit_bytes=32 * 1024 * 1024),
    )(x3, w2)
    return out.reshape(B, C, H, W)


def _chan_attn_pallas(q, k, v, temperature):
    """q, k, v: (B, heads, C_head, HW); temperature: (heads,)."""
    B, H, C, L = q.shape
    t = temperature.reshape(H).astype(jnp.float32)
    qkv_spec = pl.BlockSpec((None, None, C, L), lambda b, h: (b, h, 0, 0))
    return pl.pallas_call(
        _chan_attn_kernel,
        out_shape=jax.ShapeDtypeStruct((B, H, C, L), q.dtype),
        grid_spec=pltpu.PrefetchScalarGridSpec(
            num_scalar_prefetch=0,
            grid=(B, H),
            in_specs=[qkv_spec, qkv_spec, qkv_spec,
                      pl.BlockSpec(memory_space=pltpu.MemorySpace.SMEM)],
            out_specs=pl.BlockSpec((None, None, C, L), lambda b, h: (b, h, 0, 0)),
        ),
        compiler_params=pltpu.CompilerParams(
            dimension_semantics=("parallel", "parallel"),
            vmem_limit_bytes=32 * 1024 * 1024),
    )(q, k, v, t)


def _gated_gelu_pallas(x1, x2):
    """x1, x2: (B, C, H, W) -> gelu(x1) * x2."""
    B, C, H, W = x1.shape
    R, L = B * C, H * W
    a = x1.reshape(R, L)
    b = x2.reshape(R, L)
    tm = _pick_row_tile(R, L * 4)
    grid = (pl.cdiv(R, tm),)
    out = pl.pallas_call(
        _gated_gelu_kernel,
        out_shape=jax.ShapeDtypeStruct((R, L), x1.dtype),
        grid_spec=pltpu.PrefetchScalarGridSpec(
            num_scalar_prefetch=0,
            grid=grid,
            in_specs=[pl.BlockSpec((tm, L), lambda i: (i, 0)),
                      pl.BlockSpec((tm, L), lambda i: (i, 0))],
            out_specs=pl.BlockSpec((tm, L), lambda i: (i, 0)),
        ),
        compiler_params=pltpu.CompilerParams(
            dimension_semantics=("parallel",),
            vmem_limit_bytes=32 * 1024 * 1024),
    )(a, b)
    return out.reshape(B, C, H, W)


# ---------------------------------------------------------------------------
# XLA glue: convolutions, activations
# ---------------------------------------------------------------------------
def _act(x):
    return jax.nn.leaky_relu(x, 0.2)


def _conv(x, p, stride=1, padding=0, groups=1):
    y = lax.conv_general_dilated(
        x, p['w'], window_strides=(stride, stride),
        padding=((padding, padding), (padding, padding)),
        dimension_numbers=('NCHW', 'OIHW', 'NCHW'),
        feature_group_count=groups)
    if p['b'] is not None:
        y = y + p['b'].reshape(1, -1, 1, 1)
    return y


def _conv_transpose(x, p, stride=2, kernel=4, padding=1):
    # ConvTranspose2d(k=4, s=2, p=1) == zero-dilated conv with pad k-1-p.
    pad = kernel - 1 - padding
    y = lax.conv_general_dilated(
        x, p['w'], window_strides=(1, 1),
        padding=((pad, pad), (pad, pad)),
        lhs_dilation=(stride, stride),
        dimension_numbers=('NCHW', 'OIHW', 'NCHW'))
    if p['b'] is not None:
        y = y + p['b'].reshape(1, -1, 1, 1)
    return y


def _conv_act_conv(x, p, pad1, pad2):
    return _conv(_act(_conv(x, p['c1'], padding=pad1)), p['c2'], padding=pad2)


# ---------------------------------------------------------------------------
# Parameter init (PyTorch-like uniform(-1/sqrt(fan_in), 1/sqrt(fan_in)))
# ---------------------------------------------------------------------------
def _init_conv(key, cin, cout, ksize, groups=1, bias=True):
    kw, kb = jax.random.split(key)
    cin_g = cin // groups
    bound = float(cin_g * ksize * ksize) ** -0.5
    return {
        'w': jax.random.uniform(kw, (cout, cin_g, ksize, ksize), jnp.float32, -bound, bound),
        'b': (jax.random.uniform(kb, (cout,), jnp.float32, -bound, bound) if bias else None),
    }


def _init_cac(key, cin, cmid, cout, k1=3, k2=3):
    ka, kb = jax.random.split(key)
    return {'c1': _init_conv(ka, cin, cmid, k1), 'c2': _init_conv(kb, cmid, cout, k2)}


def _init_chanblock(key, dim, heads, ffn_factor=1):
    hidden = int(dim * ffn_factor)
    ks = jax.random.split(key, 6)
    return {
        'temperature': jnp.ones((heads,), jnp.float32),
        'norm1_w': jnp.ones((dim,), jnp.float32),
        'norm2_w': jnp.ones((dim,), jnp.float32),
        'qkv': _init_conv(ks[0], dim, dim * 3, 1, bias=False),
        'qkv_dw': _init_conv(ks[1], dim * 3, dim * 3, 3, groups=dim * 3, bias=False),
        'proj': _init_conv(ks[2], dim, dim, 1, bias=False),
        'ffn_in': _init_conv(ks[3], dim, hidden * 2, 1, bias=False),
        'ffn_dw': _init_conv(ks[4], hidden * 2, hidden * 2, 3, groups=hidden * 2, bias=False),
        'ffn_out': _init_conv(ks[5], hidden, dim, 1, bias=False),
    }


def _init_encoder(key):
    ks = jax.random.split(key, 9)
    return {
        'e11': _init_conv(ks[0], 3, 64, 3),
        'e12': _init_cac(ks[1], 64, 64, 64),
        'e13': _init_cac(ks[2], 64, 64, 64),
        'e14': _init_cac(ks[3], 64, 64, 64),
        'e21': _init_conv(ks[4], 64, 128, 3),
        'e22': _init_cac(ks[5], 128, 128, 128),
        'e23': _init_cac(ks[6], 128, 128, 128),
        'e24': _init_cac(ks[7], 128, 128, 128),
        'e31': _init_conv(ks[8], 128, 320, 3),
    }


def _init_decoder(key):
    ks = jax.random.split(key, 12)
    return {
        'd31': _init_conv(ks[0], 320, 192, 4),                 # transposed conv weights
        'd22': _init_conv(ks[1], 192 + 128, 192, 1),
        'blocks': [_init_chanblock(ks[2 + i], 192, heads=3) for i in range(6)],
        'd21': _init_conv(ks[8], 192, 64, 4),                  # transposed conv weights
        'd13': _init_cac(ks[9], 128, 64, 64, k1=1, k2=3),
        'd12': _init_cac(ks[10], 64, 64, 64),
        'd11': _init_conv(ks[11], 64, 3, 3),
    }


def init_baseline(key):
    k_enc, k_blk, k_dec = jax.random.split(key, 3)
    return {
        'enc': _init_encoder(k_enc),
        'blocks': [_init_chanblock(k, 320, heads=5) for k in jax.random.split(k_blk, 12)],
        'dec': _init_decoder(k_dec),
    }


# ---------------------------------------------------------------------------
# Model forward (functional)
# ---------------------------------------------------------------------------
def chanblock_apply(p, x, num_heads):
    b, c, h, w = x.shape
    # --- channel attention branch ---
    y = _biasfree_ln_pallas(x, p['norm1_w'])
    qkv = _conv(y, p['qkv'])                                    # 1x1
    qkv = _conv(qkv, p['qkv_dw'], padding=1, groups=3 * c)      # depthwise 3x3
    q, k, v = jnp.split(qkv, 3, axis=1)
    ch = c // num_heads
    qh = q.reshape(b, num_heads, ch, h * w)
    kh = k.reshape(b, num_heads, ch, h * w)
    vh = v.reshape(b, num_heads, ch, h * w)
    o = _chan_attn_pallas(qh, kh, vh, p['temperature'])
    o = o.reshape(b, c, h, w)
    x = x + _conv(o, p['proj'])                                 # 1x1
    # --- FFN branch ---
    y = _biasfree_ln_pallas(x, p['norm2_w'])
    y = _conv(y, p['ffn_in'])                                   # 1x1: dim -> 2*hidden
    y = _conv(y, p['ffn_dw'], padding=1, groups=y.shape[1])     # depthwise 3x3
    y1, y2 = jnp.split(y, 2, axis=1)
    g = _gated_gelu_pallas(y1, y2)
    x = x + _conv(g, p['ffn_out'])                              # 1x1
    return x


def encoder_apply(p, x):
    hx = _act(_conv(x, p['e11'], padding=1))
    for name in ('e12', 'e13', 'e14'):
        hx = _act(_conv_act_conv(hx, p[name], 1, 1) + hx)
    res1 = hx
    hx = _act(_conv(hx, p['e21'], stride=2, padding=1))
    for name in ('e22', 'e23', 'e24'):
        hx = _act(_conv_act_conv(hx, p[name], 1, 1) + hx)
    res2 = hx
    hx = _act(_conv(hx, p['e31'], stride=2, padding=1))
    return hx, res1, res2


def decoder_apply(p, x, res1, res2):
    hx = _act(_conv_transpose(x, p['d31']))                     # 320 -> 192, x2 upsample
    hx = _act(_conv(jnp.concatenate([hx, res2], axis=1), p['d22']))
    for blk in p['blocks']:
        hx = chanblock_apply(blk, hx, num_heads=3)
    hx = _act(_conv_transpose(hx, p['d21']))                    # 192 -> 64, x2 upsample
    y = _conv_act_conv(jnp.concatenate([hx, res1], axis=1), p['d13'], 0, 1)
    hx = _act(y + hx)
    hx = _act(_conv_act_conv(hx, p['d12'], 1, 1) + hx)
    hx = _act(_conv(hx, p['d11'], padding=1))
    return hx


def baseline_apply(params, x):
    hx, res1, res2 = encoder_apply(params['enc'], x)
    for blk in params['blocks']:
        hx = chanblock_apply(blk, hx, num_heads=5)
    hx = decoder_apply(params['dec'], hx, res1, res2)
    return hx + x


# ---------------------------------------------------------------------------
# Plain-JAX references for the Pallas kernels (unit checks)
# ---------------------------------------------------------------------------
def _ln_ref(x, w):
    mu = jnp.mean(x, axis=1, keepdims=True)
    var = jnp.mean((x - mu) ** 2, axis=1, keepdims=True)
    return x / jnp.sqrt(var + 1e-5) * w.reshape(1, -1, 1, 1)


def _attn_ref(q, k, v, t):
    qn = q / jnp.maximum(jnp.sqrt(jnp.sum(q * q, axis=-1, keepdims=True)), 1e-12)
    kn = k / jnp.maximum(jnp.sqrt(jnp.sum(k * k, axis=-1, keepdims=True)), 1e-12)
    a = jnp.einsum('bhcl,bhdl->bhcd', qn, kn) * t.reshape(1, -1, 1, 1)
    a = jax.nn.softmax(a, axis=-1)
    return jnp.einsum('bhcd,bhdl->bhcl', a, v)


# ---------------------------------------------------------------------------
if __name__ == "__main__":
    root = jax.random.PRNGKey(0)
    k_param, k_x, k_test = jax.random.split(root, 3)
    kk = jax.random.split(k_test, 8)

    # ---- unit checks of each Pallas kernel against a plain-JAX reference ----
    xt = jax.random.normal(kk[0], (2, 320, 8, 8), jnp.float32)
    wt = 1.0 + 0.1 * jax.random.normal(kk[1], (320,), jnp.float32)
    assert jnp.allclose(_biasfree_ln_pallas(xt, wt), _ln_ref(xt, wt),
                        atol=1e-4, rtol=1e-4), "layernorm kernel mismatch"

    qt = jax.random.normal(kk[2], (2, 5, 64, 64), jnp.float32)
    kt = jax.random.normal(kk[3], (2, 5, 64, 64), jnp.float32)
    vt = jax.random.normal(kk[4], (2, 5, 64, 64), jnp.float32)
    tt = 1.3 * jnp.ones((5,), jnp.float32)
    assert jnp.allclose(_chan_attn_pallas(qt, kt, vt, tt), _attn_ref(qt, kt, vt, tt),
                        atol=5e-2, rtol=5e-2), "channel-attention kernel mismatch"

    g1 = jax.random.normal(kk[5], (2, 320, 8, 8), jnp.float32)
    g2 = jax.random.normal(kk[6], (2, 320, 8, 8), jnp.float32)
    assert jnp.allclose(_gated_gelu_pallas(g1, g2),
                        jax.nn.gelu(g1, approximate=True) * g2,
                        atol=1e-4, rtol=1e-4), "gated-gelu kernel mismatch"

    # ---- full Baseline forward ----
    params = init_baseline(k_param)
    x = jax.random.normal(k_x, (1, 3, 32, 32), jnp.float32)
    fwd = jax.jit(baseline_apply)
    out = jax.block_until_ready(fwd(params, x))
    assert out.shape == x.shape and out.dtype == x.dtype
    assert bool(jnp.all(jnp.isfinite(out))), "non-finite output"

    print("KERNEL_OK")
</pallas_src>

<mosaic_0001>
module attributes {stable_mosaic.version = 11 : i64} {
  func.func @_biasfree_ln_kernel(%arg0: i32, %arg1: i32, %arg2: memref<1x320x64xf32, #tpu.memory_space<vmem>>, %arg3: memref<320x1xf32, #tpu.memory_space<vmem>>, %arg4: memref<1x320x64xf32, #tpu.memory_space<vmem>>) attributes {dimension_semantics = [#tpu.dimension_semantics<parallel>, #tpu.dimension_semantics<parallel>], iteration_bounds = array<i64: 2, 1>, scalar_prefetch = 0 : i64, scratch_operands = 0 : i64, tpu.core_type = #tpu.core_type<tc>, window_params = [{transform_indices = @transform_0, window_bounds = array<i64: 1, 320, 64>}, {pipeline_mode = #tpu.pipeline_mode<synchronous>, transform_indices = @transform_1, window_bounds = array<i64: 320, 1>}, {transform_indices = @transform_2, window_bounds = array<i64: 1, 320, 64>}]} {
    %c0 = arith.constant 0 : index
    %c0_0 = arith.constant 0 : index
    %c0_1 = arith.constant 0 : index
    %0 = vector.load %arg2[%c0, %c0_0, %c0_1] : memref<1x320x64xf32, #tpu.memory_space<vmem>>, vector<1x320x64xf32>
    %1 = vector.shape_cast %0 : vector<1x320x64xf32> to vector<320x64xf32>
    %cst = arith.constant dense<0.000000e+00> : vector<64xf32>
    %2 = vector.multi_reduction <add>, %1, %cst [0] : vector<320x64xf32> to vector<64xf32>
    %3 = vector.shape_cast %2 : vector<64xf32> to vector<1x64xf32>
    %cst_2 = arith.constant 3.125000e-03 : f32
    %4 = vector.broadcast %cst_2 : f32 to vector<1x64xf32>
    %5 = arith.mulf %3, %4 : vector<1x64xf32>
    %6 = vector.broadcast %5 : vector<1x64xf32> to vector<320x64xf32>
    %7 = arith.subf %1, %6 : vector<320x64xf32>
    %8 = arith.mulf %7, %7 : vector<320x64xf32>
    %cst_3 = arith.constant dense<0.000000e+00> : vector<64xf32>
    %9 = vector.multi_reduction <add>, %8, %cst_3 [0] : vector<320x64xf32> to vector<64xf32>
    %10 = vector.shape_cast %9 : vector<64xf32> to vector<1x64xf32>
    %cst_4 = arith.constant 3.125000e-03 : f32
    %11 = vector.broadcast %cst_4 : f32 to vector<1x64xf32>
    %12 = arith.mulf %10, %11 : vector<1x64xf32>
    %cst_5 = arith.constant 9.99999974E-6 : f32
    %13 = vector.broadcast %cst_5 : f32 to vector<1x64xf32>
    %14 = arith.addf %12, %13 : vector<1x64xf32>
    %15 = math.rsqrt %14 : vector<1x64xf32>
    %c0_6 = arith.constant 0 : index
    %c0_7 = arith.constant 0 : index
    %16 = vector.load %arg3[%c0_6, %c0_7] : memref<320x1xf32, #tpu.memory_space<vmem>>, vector<320x1xf32>
    %17 = vector.broadcast %15 : vector<1x64xf32> to vector<320x64xf32>
    %18 = arith.mulf %1, %17 : vector<320x64xf32>
    %19 = vector.broadcast %16 : vector<320x1xf32> to vector<320x64xf32>
    %20 = arith.mulf %18, %19 : vector<320x64xf32>
    %c0_8 = arith.constant 0 : index
    %c0_9 = arith.constant 0 : index
    %c0_10 = arith.constant 0 : index
    %21 = vector.load %arg4[%c0_8, %c0_9, %c0_10] : memref<1x320x64xf32, #tpu.memory_space<vmem>>, vector<1x320x64xf32>
    %22 = vector.shape_cast %21 : vector<1x320x64xf32> to vector<320x64xf32>
    %23 = vector.shape_cast %20 : vector<320x64xf32> to vector<1x320x64xf32>
    tpu.vector_store %arg4[%c0_8, %c0_9, %c0_10], %23 {strides = array<i32>} : memref<1x320x64xf32, #tpu.memory_space<vmem>>, vector<1x320x64xf32>,
    return
  }
  func.func @transform_0(%arg0: i32, %arg1: i32) -> (i32, i32, i32) {
    %c0_i32 = arith.constant 0 : i32
    %c0_i32_0 = arith.constant 0 : i32
    return %arg0, %c0_i32, %arg1 : i32, i32, i32
  }
  func.func @transform_1(%arg0: i32, %arg1: i32) -> (i32, i32) {
    %c0_i32 = arith.constant 0 : i32
    %c0_i32_0 = arith.constant 0 : i32
    %c0_i32_1 = arith.constant 0 : i32
    return %c0_i32, %c0_i32_0 : i32, i32
  }
  func.func @transform_2(%arg0: i32, %arg1: i32) -> (i32, i32, i32) {
    %c0_i32 = arith.constant 0 : i32
    %c0_i32_0 = arith.constant 0 : i32
    return %arg0, %c0_i32, %arg1 : i32, i32, i32
  }
}

</mosaic_0001>

<llo_original>
// kernel: tpu_custom_call.1
$region0: #{tpu_custom_call.1}
  #allocation0 [shape = 'u32[]', space=smem, size = 0x4, offset = 0x4, fixed_abs, tag = 'smem constant byte address 0x4 - core index']
  #allocation1 [shape = 'u32[144,128]{1,0:T(1,128)}', space=vmem, size = 0x12000, scoped, tag = 'internal scratch']
  %s0 = inlined_call_operand.vmem [shape: f32[2,320,64], index: 0, kind: input, shape index: {}]
  %s1 = inlined_call_operand.vmem [shape: f32[320,1], index: 1, kind: input, shape index: {}]
  %s2 = inlined_call_operand.vmem [shape: f32[2,320,64], index: 2, kind: output, shape index: {}]
  %s3 = sld [smem:[#allocation0]]
  $region41: #{tpu_custom_call.1} parent=0
    _
  %s5 = ssub.s32 1, %s3
  %s6 = scalar_select 0, %s5, %s3
  loop: start=0, step=1, limit=4
  $region2: #{tpu_custom_call.1} parent=0 // loop_pre_header
    _
  $region3: #{tpu_custom_call.1} parent=0 // loop_header
    %s8 = sphi 0, %s12
    %p9 = scmp.ge.s32.totalorder %s8, 4
    %s15 = sphi 0, %s27
    %s16 = sphi 0, %s23
    %s17 = sphi 0, %s15
    %s18 = sphi 0, %s16
    %s19 = sphi 0, %s17
    %s20 = sphi 0, %s18
    %s32 = sphi 0, %s34
    %s35 = sphi 0, %s32
    %s36 = sphi 0, %s35
    %s52 = sphi 0, %s36
    %s56 = sphi 0, %s56
    %s58 = sphi 0, %s56
    %s59 = sphi 0, %s58
    %s73 = sphi 0, %s59
    %s81 = sphi 0, %s83
    %s84 = sphi 0, %s81
    %s85 = sphi 0, %s84
    %s101 = sphi 0, %s85
  $region4: #{tpu_custom_call.1} parent=0 // loop_header_branch
    %11 = sbr.rel (%p9) target = $region8
  $region5: #{tpu_custom_call.1} parent=0 // loop_body
    %s13 = ssub.s32 %s8, 1
    %s14 = ssub.s32 %s8, 2
    %s21 = sadd.s32 1, %s16
    %p22 = scmp.ge.s32.totalorder %s21, 1
    %s23 = scalar_select %p22, 0, %s21
    %s24 = sadd.s32 1, %s15
    %s25 = scalar_select %p22, %s24, %s15
    %p26 = scmp.ge.s32.totalorder %s25, 2
    %s27 = scalar_select %p26, 0, %s25
    %s28 = ssub.s32 %s15, %s27
    %s29 = ssub.s32 %s16, %s23
    %s30 = sor.u32 %s28, %s29
    %p31 = scmp.eq.s32.totalorder %s30, 0
    %s33 = sadd.s32 %s32, 1
    %s34 = scalar_select %p31, %s32, %s33
    %p37 = pneg %p31
    %p38 = scmp.eq.s32.totalorder %s8, 1
    %p39 = por %p37, %p38
    %p40 = scmp.ne.s32.totalorder %s32, %s35
    %p41 = scmp.eq.s32.totalorder %s8, 0
    %p42 = por %p40, %p41
    %p43 = scmp.ne.s32.totalorder %s32, %s35
    %p44 = scmp.eq.s32.totalorder %s13, 1
    %p45 = por %p43, %p44
    %p46 = scmp.ne.s32.totalorder %s35, %s36
    %p47 = scmp.eq.s32.totalorder %s13, 0
    %p48 = por %p46, %p47
    %p49 = scmp.ne.s32.totalorder %s35, %s36
    %p50 = scmp.eq.s32.totalorder %s14, 1
    %p51 = por %p49, %p50
    %p53 = scmp.ne.s32.totalorder %s36, %s52
    %p54 = scmp.eq.s32.totalorder %s14, 0
    %p55 = por %p53, %p54
    %s57 = sadd.s32 %s56, 1
    %p60 = scmp.eq.s32.totalorder %s8, 1
    %p61 = scmp.ne.s32.totalorder %s56, %s58
    %p62 = scmp.eq.s32.totalorder %s8, 0
    %p63 = por %p61, %p62
    %p64 = scmp.ne.s32.totalorder %s56, %s58
    %p65 = scmp.eq.s32.totalorder %s13, 1
    %p66 = por %p64, %p65
    %p67 = scmp.ne.s32.totalorder %s58, %s59
    %p68 = scmp.eq.s32.totalorder %s13, 0
    %p69 = por %p67, %p68
    %p70 = scmp.ne.s32.totalorder %s58, %s59
    %p71 = scmp.eq.s32.totalorder %s14, 1
    %p72 = por %p70, %p71
    %p74 = scmp.ne.s32.totalorder %s59, %s73
    %p75 = scmp.eq.s32.totalorder %s14, 0
    %p76 = por %p74, %p75
    %s77 = ssub.s32 %s15, %s27
    %s78 = ssub.s32 %s16, %s23
    %s79 = sor.u32 %s77, %s78
    %p80 = scmp.eq.s32.totalorder %s79, 0
    %s82 = sadd.s32 %s81, 1
    %s83 = scalar_select %p80, %s81, %s82
    %p86 = pneg %p80
    %p87 = scmp.eq.s32.totalorder %s8, 1
    %p88 = por %p86, %p87
    %p89 = scmp.ne.s32.totalorder %s81, %s84
    %p90 = scmp.eq.s32.totalorder %s8, 0
    %p91 = por %p89, %p90
    %p92 = scmp.ne.s32.totalorder %s81, %s84
    %p93 = scmp.eq.s32.totalorder %s13, 1
    %p94 = por %p92, %p93
    %p95 = scmp.ne.s32.totalorder %s84, %s85
    %p96 = scmp.eq.s32.totalorder %s13, 0
    %p97 = por %p95, %p96
    %p98 = scmp.ne.s32.totalorder %s84, %s85
    %p99 = scmp.eq.s32.totalorder %s14, 1
    %p100 = por %p98, %p99
    %p102 = scmp.ne.s32.totalorder %s85, %s101
    %p103 = scmp.eq.s32.totalorder %s14, 0
    %p104 = por %p102, %p103
    %p105 = scmp.le.s32.totalorder 1, %s8
    %p106 = scmp.lt.s32.totalorder %s8, 3
    %p107 = pnand %p105, %p106
    %p108 = pneg %p107
    // Predicated region
    $region9: #{tpu_custom_call.1} parent=5 // pred_check
      _
    $region10: #{tpu_custom_call.1} parent=5 // pred_check_branch
      %110 = sbr.rel (%p107) target = $region12
    $region11: #{tpu_custom_call.1} parent=5 // pred_region
      %s111 = ssub.s32 %s8, 1
      // Predicated region
      $region13: #{tpu_custom_call.1} parent=11 // pred_check
        %p112 = pneg %p69
      $region14: #{tpu_custom_call.1} parent=11 // pred_check_branch
        %114 = sbr.rel (%p112) target = $region16
      $region15: #{tpu_custom_call.1} parent=11 // pred_region
        _
      $region16: #{tpu_custom_call.1} parent=11 // pred_fallthru
        _
    $region12: #{tpu_custom_call.1} parent=5 // pred_fallthru
      _
    %p115 = scmp.lt.s32.totalorder %s8, 2
    // Predicated region
    $region17: #{tpu_custom_call.1} parent=5 // pred_check
      %p116 = pneg %p115
    $region18: #{tpu_custom_call.1} parent=5 // pred_check_branch
      %118 = sbr.rel (%p116) target = $region20
    $region19: #{tpu_custom_call.1} parent=5 // pred_region
      // Predicated region
      $region21: #{tpu_custom_call.1} parent=19 // pred_check
        %p119 = pneg %p42
      $region22: #{tpu_custom_call.1} parent=19 // pred_check_branch
        %121 = sbr.rel (%p119) target = $region24
      $region23: #{tpu_custom_call.1} parent=19 // pred_region
        %p122 = scmp.lt.s32.totalorder %s15, 1
        %s123 = scalar_select %p122, %s15, 1
        %p124 = scmp.lt.s32.totalorder %s16, 0
        %s125 = scalar_select %p124, %s16, 0
        %s126 = smul.addr %s123, 40
        %s127 = sadd.s32 %s125, %s126
        %s128 = smul.addr %s127, 8
        %s129 = scalar_lea.vmem %s0, %s128
      $region24: #{tpu_custom_call.1} parent=19 // pred_fallthru
        _
    $region20: #{tpu_custom_call.1} parent=5 // pred_fallthru
      _
    %p130 = scmp.le.s32.totalorder 1, %s8
    %p131 = scmp.lt.s32.totalorder %s8, 3
    %p132 = pnand %p130, %p131
    %p133 = pneg %p132
    // Predicated region
    $region25: #{tpu_custom_call.1} parent=5 // pred_check
      _
    $region26: #{tpu_custom_call.1} parent=5 // pred_check_branch
      %135 = sbr.rel (%p132) target = $region28
    $region27: #{tpu_custom_call.1} parent=5 // pred_region
      %s136 = ssub.s32 %s8, 1
      %p137 = scmp.lt.s32.totalorder %s17, 1
      %s138 = scalar_select %p137, %s17, 1
      %p139 = scmp.lt.s32.totalorder %s18, 0
      %s140 = scalar_select %p139, %s18, 0
      %s141 = smul.addr %s138, 40
      %s142 = sadd.s32 %s140, %s141
      %s143 = smul.addr %s142, 8
      %s144 = scalar_lea.vmem %s0, %s143
      %p145 = pneg %p48
      %p146 = pneg %p45
      %p147 = pneg %p69
      %p148 = pneg %p66
      %p149 = pneg %p97
      %p150 = pneg %p94
      %p151 = scmp.lt.s32.totalorder %s17, 1
      %s152 = scalar_select %p151, %s17, 1
      %p153 = scmp.lt.s32.totalorder %s18, 0
      %s154 = scalar_select %p153, %s18, 0
      %s155 = smul.addr %s152, 40
      %s156 = sadd.s32 %s154, %s155
      %s157 = smul.addr %s156, 8
      %s158 = scalar_lea.vmem %s2, %s157
      %p159 = scmp.lt.s32.totalorder %s17, 1
      %s160 = scalar_select %p159, %s17, 1
      %p161 = scmp.lt.s32.totalorder %s18, 0
      %s162 = scalar_select %p161, %s18, 0
      %s163 = smul.addr %s160, 40
      %s164 = sadd.s32 %s162, %s163
      %s165 = smul.addr %s164, 8
      %s166 = scalar_lea.vmem %s0, %s165
      %p167 = scmp.lt.s32.totalorder %s17, 1
      %s168 = scalar_select %p167, %s17, 1
      %p169 = scmp.lt.s32.totalorder %s18, 0
      %s170 = scalar_select %p169, %s18, 0
      %s171 = smul.addr %s168, 40
      %s172 = sadd.s32 %s170, %s171
      %s173 = smul.addr %s172, 8
      %s174 = scalar_lea.vmem %s2, %s173
      %v175 = vld [vmem:[%s166] sm:$0xff]
      %v176 = vld [vmem:[%s166 + $0x8] sm:$0xff]
      %v177 = vld [vmem:[%s166 + $0x10] sm:$0xff]
      %v178 = vld [vmem:[%s166 + $0x18] sm:$0xff]
      %v179 = vld [vmem:[%s166 + $0x20] sm:$0xff]
      %v180 = vld [vmem:[%s166 + $0x28] sm:$0xff]
      %v181 = vld [vmem:[%s166 + $0x30] sm:$0xff]
      %v182 = vld [vmem:[%s166 + $0x38] sm:$0xff]
      %v183 = vld [vmem:[%s166 + $0x40] sm:$0xff]
      %v184 = vld [vmem:[%s166 + $0x48] sm:$0xff]
      %v185 = vld [vmem:[%s166 + $0x50] sm:$0xff]
      %v186 = vld [vmem:[%s166 + $0x58] sm:$0xff]
      %v187 = vld [vmem:[%s166 + $0x60] sm:$0xff]
      %v188 = vld [vmem:[%s166 + $0x68] sm:$0xff]
      %v189 = vld [vmem:[%s166 + $0x70] sm:$0xff]
      %v190 = vld [vmem:[%s166 + $0x78] sm:$0xff]
      %v191 = vld [vmem:[%s166 + $0x80] sm:$0xff]
      %v192 = vld [vmem:[%s166 + $0x88] sm:$0xff]
      %v193 = vld [vmem:[%s166 + $0x90] sm:$0xff]
      %v194 = vld [vmem:[%s166 + $0x98] sm:$0xff]
      %v195 = vld [vmem:[%s166 + $0xa0] sm:$0xff]
      %v196 = vld [vmem:[%s166 + $0xa8] sm:$0xff]
      %v197 = vld [vmem:[%s166 + $0xb0] sm:$0xff]
      %v198 = vld [vmem:[%s166 + $0xb8] sm:$0xff]
      %v199 = vld [vmem:[%s166 + $0xc0] sm:$0xff]
      %v200 = vld [vmem:[%s166 + $0xc8] sm:$0xff]
      %v201 = vld [vmem:[%s166 + $0xd0] sm:$0xff]
      %v202 = vld [vmem:[%s166 + $0xd8] sm:$0xff]
      %v203 = vld [vmem:[%s166 + $0xe0] sm:$0xff]
      %v204 = vld [vmem:[%s166 + $0xe8] sm:$0xff]
      %v205 = vld [vmem:[%s166 + $0xf0] sm:$0xff]
      %v206 = vld [vmem:[%s166 + $0xf8] sm:$0xff]
      %v207 = vld [vmem:[%s166 + $0x100] sm:$0xff]
      %v208 = vld [vmem:[%s166 + $0x108] sm:$0xff]
      %v209 = vld [vmem:[%s166 + $0x110] sm:$0xff]
      %v210 = vld [vmem:[%s166 + $0x118] sm:$0xff]
      %v211 = vld [vmem:[%s166 + $0x120] sm:$0xff]
      %v212 = vld [vmem:[%s166 + $0x128] sm:$0xff]
      %v213 = vld [vmem:[%s166 + $0x130] sm:$0xff]
      %v214 = vld [vmem:[%s166 + $0x138] sm:$0xff]
      %vm215 = vcmask 523264
      %v216 = vsel %vm215, %v175, 0.0
      %v217 = vsel %vm215, %v176, 0.0
      %v218 = vadd.f32 %v216, %v217
      %v219 = vsel %vm215, %v177, 0.0
      %v220 = vadd.f32 %v218, %v219
      %v221 = vsel %vm215, %v178, 0.0
      %v222 = vadd.f32 %v220, %v221
      %v223 = vsel %vm215, %v179, 0.0
      %v224 = vadd.f32 %v222, %v223
      %v225 = vsel %vm215, %v180, 0.0
      %v226 = vadd.f32 %v224, %v225
      %v227 = vsel %vm215, %v181, 0.0
      %v228 = vadd.f32 %v226, %v227
      %v229 = vsel %vm215, %v182, 0.0
      %v230 = vadd.f32 %v228, %v229
      %v231 = vsel %vm215, %v183, 0.0
      %v232 = vadd.f32 %v230, %v231
      %v233 = vsel %vm215, %v184, 0.0
      %v234 = vadd.f32 %v232, %v233
      %v235 = vsel %vm215, %v185, 0.0
      %v236 = vadd.f32 %v234, %v235
      %v237 = vsel %vm215, %v186, 0.0
      %v238 = vadd.f32 %v236, %v237
      %v239 = vsel %vm215, %v187, 0.0
      %v240 = vadd.f32 %v238, %v239
      %v241 = vsel %vm215, %v188, 0.0
      %v242 = vadd.f32 %v240, %v241
      %v243 = vsel %vm215, %v189, 0.0
      %v244 = vadd.f32 %v242, %v243
      %v245 = vsel %vm215, %v190, 0.0
      %v246 = vadd.f32 %v244, %v245
      %v247 = vsel %vm215, %v191, 0.0
      %v248 = vadd.f32 %v246, %v247
      %v249 = vsel %vm215, %v192, 0.0
      %v250 = vadd.f32 %v248, %v249
      %v251 = vsel %vm215, %v193, 0.0
      %v252 = vadd.f32 %v250, %v251
      %v253 = vsel %vm215, %v194, 0.0
      %v254 = vadd.f32 %v252, %v253
      %v255 = vsel %vm215, %v195, 0.0
      %v256 = vadd.f32 %v254, %v255
      %v257 = vsel %vm215, %v196, 0.0
      %v258 = vadd.f32 %v256, %v257
      %v259 = vsel %vm215, %v197, 0.0
      %v260 = vadd.f32 %v258, %v259
      %v261 = vsel %vm215, %v198, 0.0
      %v262 = vadd.f32 %v260, %v261
      %v263 = vsel %vm215, %v199, 0.0
      %v264 = vadd.f32 %v262, %v263
      %v265 = vsel %vm215, %v200, 0.0
      %v266 = vadd.f32 %v264, %v265
      %v267 = vsel %vm215, %v201, 0.0
      %v268 = vadd.f32 %v266, %v267
      %v269 = vsel %vm215, %v202, 0.0
      %v270 = vadd.f32 %v268, %v269
      %v271 = vsel %vm215, %v203, 0.0
      %v272 = vadd.f32 %v270, %v271
      %v273 = vsel %vm215, %v204, 0.0
      %v274 = vadd.f32 %v272, %v273
      %v275 = vsel %vm215, %v205, 0.0
      %v276 = vadd.f32 %v274, %v275
      %v277 = vsel %vm215, %v206, 0.0
      %v278 = vadd.f32 %v276, %v277
      %v279 = vsel %vm215, %v207, 0.0
      %v280 = vadd.f32 %v278, %v279
      %v281 = vsel %vm215, %v208, 0.0
      %v282 = vadd.f32 %v280, %v281
      %v283 = vsel %vm215, %v209, 0.0
      %v284 = vadd.f32 %v282, %v283
      %v285 = vsel %vm215, %v210, 0.0
      %v286 = vadd.f32 %v284, %v285
      %v287 = vsel %vm215, %v211, 0.0
      %v288 = vadd.f32 %v286, %v287
      %v289 = vsel %vm215, %v212, 0.0
      %v290 = vadd.f32 %v288, %v289
      %v291 = vsel %vm215, %v213, 0.0
      %v292 = vadd.f32 %v290, %v291
      %v293 = vsel %vm215, %v214, 0.0
      %v294 = vadd.f32 %v292, %v293
      %v295 = vrot.slane %v294, 4
      %v296 = vadd.f32 %v294, %v295
      %v297 = vrot.slane %v296, 2
      %v298 = vadd.f32 %v296, %v297
      %v299 = vrot.slane %v298, 1
      %v300 = vadd.f32 %v298, %v299
      %v301 = vmul.f32 %v300, 0.003125
      %v302 = vsub.f32 %v175, %v301
      %v303 = vsub.f32 %v176, %v301
      %v304 = vsub.f32 %v177, %v301
      %v305 = vsub.f32 %v178, %v301
      %v306 = vsub.f32 %v179, %v301
      %v307 = vsub.f32 %v180, %v301
      %v308 = vsub.f32 %v181, %v301
      %v309 = vsub.f32 %v182, %v301
      %v310 = vsub.f32 %v183, %v301
      %v311 = vsub.f32 %v184, %v301
      %v312 = vsub.f32 %v185, %v301
      %v313 = vsub.f32 %v186, %v301
      %v314 = vsub.f32 %v187, %v301
      %v315 = vsub.f32 %v188, %v301
      %v316 = vsub.f32 %v189, %v301
      %v317 = vsub.f32 %v190, %v301
      %v318 = vsub.f32 %v191, %v301
      %v319 = vsub.f32 %v192, %v301
      %v320 = vsub.f32 %v193, %v301
      %v321 = vsub.f32 %v194, %v301
      %v322 = vsub.f32 %v195, %v301
      %v323 = vsub.f32 %v196, %v301
      %v324 = vsub.f32 %v197, %v301
      %v325 = vsub.f32 %v198, %v301
      %v326 = vsub.f32 %v199, %v301
      %v327 = vsub.f32 %v200, %v301
      %v328 = vsub.f32 %v201, %v301
      %v329 = vsub.f32 %v202, %v301
      %v330 = vsub.f32 %v203, %v301
      %v331 = vsub.f32 %v204, %v301
      %v332 = vsub.f32 %v205, %v301
      %v333 = vsub.f32 %v206, %v301
      %v334 = vsub.f32 %v207, %v301
      %v335 = vsub.f32 %v208, %v301
      %v336 = vsub.f32 %v209, %v301
      %v337 = vsub.f32 %v210, %v301
      %v338 = vsub.f32 %v211, %v301
      %v339 = vsub.f32 %v212, %v301
      %v340 = vsub.f32 %v213, %v301
      %v341 = vsub.f32 %v214, %v301
      %v342 = vmul.f32 %v302, %v302
      %v343 = vmul.f32 %v303, %v303
      %v344 = vmul.f32 %v304, %v304
      %v345 = vmul.f32 %v305, %v305
      %v346 = vmul.f32 %v306, %v306
      %v347 = vmul.f32 %v307, %v307
      %v348 = vmul.f32 %v308, %v308
      %v349 = vmul.f32 %v309, %v309
      %v350 = vmul.f32 %v310, %v310
      %v351 = vmul.f32 %v311, %v311
      %v352 = vmul.f32 %v312, %v312
      %v353 = vmul.f32 %v313, %v313
      %v354 = vmul.f32 %v314, %v314
      %v355 = vmul.f32 %v315, %v315
      %v356 = vmul.f32 %v316, %v316
      %v357 = vmul.f32 %v317, %v317
      %v358 = vmul.f32 %v318, %v318
      %v359 = vmul.f32 %v319, %v319
      %v360 = vmul.f32 %v320, %v320
      %v361 = vmul.f32 %v321, %v321
      %v362 = vmul.f32 %v322, %v322
      %v363 = vmul.f32 %v323, %v323
      %v364 = vmul.f32 %v324, %v324
      %v365 = vmul.f32 %v325, %v325
      %v366 = vmul.f32 %v326, %v326
      %v367 = vmul.f32 %v327, %v327
      %v368 = vmul.f32 %v328, %v328
      %v369 = vmul.f32 %v329, %v329
      %v370 = vmul.f32 %v330, %v330
      %v371 = vmul.f32 %v331, %v331
      %v372 = vmul.f32 %v332, %v332
      %v373 = vmul.f32 %v333, %v333
      %v374 = vmul.f32 %v334, %v334
      %v375 = vmul.f32 %v335, %v335
      %v376 = vmul.f32 %v336, %v336
      %v377 = vmul.f32 %v337, %v337
      %v378 = vmul.f32 %v338, %v338
      %v379 = vmul.f32 %v339, %v339
      %v380 = vmul.f32 %v340, %v340
      %v381 = vmul.f32 %v341, %v341
      %v382 = vsel %vm215, %v342, 0.0
      %v383 = vsel %vm215, %v343, 0.0
      %v384 = vadd.f32 %v382, %v383
      %v385 = vsel %vm215, %v344, 0.0
      %v386 = vadd.f32 %v384, %v385
      %v387 = vsel %vm215, %v345, 0.0
      %v388 = vadd.f32 %v386, %v387
      %v389 = vsel %vm215, %v346, 0.0
      %v390 = vadd.f32 %v388, %v389
      %v391 = vsel %vm215, %v347, 0.0
      %v392 = vadd.f32 %v390, %v391
      %v393 = vsel %vm215, %v348, 0.0
      %v394 = vadd.f32 %v392, %v393
      %v395 = vsel %vm215, %v349, 0.0
      %v396 = vadd.f32 %v394, %v395
      %v397 = vsel %vm215, %v350, 0.0
      %v398 = vadd.f32 %v396, %v397
      %v399 = vsel %vm215, %v351, 0.0
      %v400 = vadd.f32 %v398, %v399
      %v401 = vsel %vm215, %v352, 0.0
      %v402 = vadd.f32 %v400, %v401
      %v403 = vsel %vm215, %v353, 0.0
      %v404 = vadd.f32 %v402, %v403
      %v405 = vsel %vm215, %v354, 0.0
      %v406 = vadd.f32 %v404, %v405
      %v407 = vsel %vm215, %v355, 0.0
      %v408 = vadd.f32 %v406, %v407
      %v409 = vsel %vm215, %v356, 0.0
      %v410 = vadd.f32 %v408, %v409
      %v411 = vsel %vm215, %v357, 0.0
      %v412 = vadd.f32 %v410, %v411
      %v413 = vsel %vm215, %v358, 0.0
      %v414 = vadd.f32 %v412, %v413
      %v415 = vsel %vm215, %v359, 0.0
      %v416 = vadd.f32 %v414, %v415
      %v417 = vsel %vm215, %v360, 0.0
      %v418 = vadd.f32 %v416, %v417
      %v419 = vsel %vm215, %v361, 0.0
      %v420 = vadd.f32 %v418, %v419
      %v421 = vsel %vm215, %v362, 0.0
      %v422 = vadd.f32 %v420, %v421
      %v423 = vsel %vm215, %v363, 0.0
      %v424 = vadd.f32 %v422, %v423
      %v425 = vsel %vm215, %v364, 0.0
      %v426 = vadd.f32 %v424, %v425
      %v427 = vsel %vm215, %v365, 0.0
      %v428 = vadd.f32 %v426, %v427
      %v429 = vsel %vm215, %v366, 0.0
      %v430 = vadd.f32 %v428, %v429
      %v431 = vsel %vm215, %v367, 0.0
      %v432 = vadd.f32 %v430, %v431
      %v433 = vsel %vm215, %v368, 0.0
      %v434 = vadd.f32 %v432, %v433
      %v435 = vsel %vm215, %v369, 0.0
      %v436 = vadd.f32 %v434, %v435
      %v437 = vsel %vm215, %v370, 0.0
      %v438 = vadd.f32 %v436, %v437
      %v439 = vsel %vm215, %v371, 0.0
      %v440 = vadd.f32 %v438, %v439
      %v441 = vsel %vm215, %v372, 0.0
      %v442 = vadd.f32 %v440, %v441
      %v443 = vsel %vm215, %v373, 0.0
      %v444 = vadd.f32 %v442, %v443
      %v445 = vsel %vm215, %v374, 0.0
      %v446 = vadd.f32 %v444, %v445
      %v447 = vsel %vm215, %v375, 0.0
      %v448 = vadd.f32 %v446, %v447
      %v449 = vsel %vm215, %v376, 0.0
      %v450 = vadd.f32 %v448, %v449
      %v451 = vsel %vm215, %v377, 0.0
      %v452 = vadd.f32 %v450, %v451
      %v453 = vsel %vm215, %v378, 0.0
      %v454 = vadd.f32 %v452, %v453
      %v455 = vsel %vm215, %v379, 0.0
      %v456 = vadd.f32 %v454, %v455
      %v457 = vsel %vm215, %v380, 0.0
      %v458 = vadd.f32 %v456, %v457
      %v459 = vsel %vm215, %v381, 0.0
      %v460 = vadd.f32 %v458, %v459
      %v461 = vrot.slane %v460, 4
      %v462 = vadd.f32 %v460, %v461
      %v463 = vrot.slane %v462, 2
      %v464 = vadd.f32 %v462, %v463
      %v465 = vrot.slane %v464, 1
      %v466 = vadd.f32 %v464, %v465
      %v467 = vmul.f32 %v466, 0.003125
      %v468 = vadd.f32 %v467, 1e-05
      %v469 = vrsqrt.pop %v468
      %v470 = vld [vmem:[%s1] sm:$0xff]
      %v471 = vld [vmem:[%s1 + $0x8] sm:$0xff]
      %v472 = vld [vmem:[%s1 + $0x10] sm:$0xff]
      %v473 = vld [vmem:[%s1 + $0x18] sm:$0xff]
      %v474 = vld [vmem:[%s1 + $0x20] sm:$0xff]
      %v475 = vld [vmem:[%s1 + $0x28] sm:$0xff]
      %v476 = vld [vmem:[%s1 + $0x30] sm:$0xff]
      %v477 = vld [vmem:[%s1 + $0x38] sm:$0xff]
      %v478 = vld [vmem:[%s1 + $0x40] sm:$0xff]
      %v479 = vld [vmem:[%s1 + $0x48] sm:$0xff]
      %v480 = vld [vmem:[%s1 + $0x50] sm:$0xff]
      %v481 = vld [vmem:[%s1 + $0x58] sm:$0xff]
      %v482 = vld [vmem:[%s1 + $0x60] sm:$0xff]
      %v483 = vld [vmem:[%s1 + $0x68] sm:$0xff]
      %v484 = vld [vmem:[%s1 + $0x70] sm:$0xff]
      %v485 = vld [vmem:[%s1 + $0x78] sm:$0xff]
      %v486 = vld [vmem:[%s1 + $0x80] sm:$0xff]
      %v487 = vld [vmem:[%s1 + $0x88] sm:$0xff]
      %v488 = vld [vmem:[%s1 + $0x90] sm:$0xff]
      %v489 = vld [vmem:[%s1 + $0x98] sm:$0xff]
      %v490 = vld [vmem:[%s1 + $0xa0] sm:$0xff]
      %v491 = vld [vmem:[%s1 + $0xa8] sm:$0xff]
      %v492 = vld [vmem:[%s1 + $0xb0] sm:$0xff]
      %v493 = vld [vmem:[%s1 + $0xb8] sm:$0xff]
      %v494 = vld [vmem:[%s1 + $0xc0] sm:$0xff]
      %v495 = vld [vmem:[%s1 + $0xc8] sm:$0xff]
      %v496 = vld [vmem:[%s1 + $0xd0] sm:$0xff]
      %v497 = vld [vmem:[%s1 + $0xd8] sm:$0xff]
      %v498 = vld [vmem:[%s1 + $0xe0] sm:$0xff]
      %v499 = vld [vmem:[%s1 + $0xe8] sm:$0xff]
      %v500 = vld [vmem:[%s1 + $0xf0] sm:$0xff]
      %v501 = vld [vmem:[%s1 + $0xf8] sm:$0xff]
      %v502 = vld [vmem:[%s1 + $0x100] sm:$0xff]
      %v503 = vld [vmem:[%s1 + $0x108] sm:$0xff]
      %v504 = vld [vmem:[%s1 + $0x110] sm:$0xff]
      %v505 = vld [vmem:[%s1 + $0x118] sm:$0xff]
      %v506 = vld [vmem:[%s1 + $0x120] sm:$0xff]
      %v507 = vld [vmem:[%s1 + $0x128] sm:$0xff]
      %v508 = vld [vmem:[%s1 + $0x130] sm:$0xff]
      %v509 = vld [vmem:[%s1 + $0x138] sm:$0xff]
      %v510 = vmul.f32 %v175, %v469
      %v511 = vmul.f32 %v176, %v469
      %v512 = vmul.f32 %v177, %v469
      %v513 = vmul.f32 %v178, %v469
      %v514 = vmul.f32 %v179, %v469
      %v515 = vmul.f32 %v180, %v469
      %v516 = vmul.f32 %v181, %v469
      %v517 = vmul.f32 %v182, %v469
      %v518 = vmul.f32 %v183, %v469
      %v519 = vmul.f32 %v184, %v469
      %v520 = vmul.f32 %v185, %v469
      %v521 = vmul.f32 %v186, %v469
      %v522 = vmul.f32 %v187, %v469
      %v523 = vmul.f32 %v188, %v469
      %v524 = vmul.f32 %v189, %v469
      %v525 = vmul.f32 %v190, %v469
      %v526 = vmul.f32 %v191, %v469
      %v527 = vmul.f32 %v192, %v469
      %v528 = vmul.f32 %v193, %v469
      %v529 = vmul.f32 %v194, %v469
      %v530 = vmul.f32 %v195, %v469
      %v531 = vmul.f32 %v196, %v469
      %v532 = vmul.f32 %v197, %v469
      %v533 = vmul.f32 %v198, %v469
      %v534 = vmul.f32 %v199, %v469
      %v535 = vmul.f32 %v200, %v469
      %v536 = vmul.f32 %v201, %v469
      %v537 = vmul.f32 %v202, %v469
      %v538 = vmul.f32 %v203, %v469
      %v539 = vmul.f32 %v204, %v469
      %v540 = vmul.f32 %v205, %v469
      %v541 = vmul.f32 %v206, %v469
      %v542 = vmul.f32 %v207, %v469
      %v543 = vmul.f32 %v208, %v469
      %v544 = vmul.f32 %v209, %v469
      %v545 = vmul.f32 %v210, %v469
      %v546 = vmul.f32 %v211, %v469
      %v547 = vmul.f32 %v212, %v469
      %v548 = vmul.f32 %v213, %v469
      %v549 = vmul.f32 %v214, %v469
      %551 = vset.pattern.permute.xlu0 0
      %552 = vperm.xlu0 %551, %v470
      %v553 = vpop.permute.xlu0 %552
      %556 = vset.pattern.permute.xlu0 0
      %557 = vperm.xlu0 %556, %v471
      %v558 = vpop.permute.xlu0 %557
      %561 = vset.pattern.permute.xlu0 0
      %562 = vperm.xlu0 %561, %v472
      %v563 = vpop.permute.xlu0 %562
      %566 = vset.pattern.permute.xlu0 0
      %567 = vperm.xlu0 %566, %v473
      %v568 = vpop.permute.xlu0 %567
      %571 = vset.pattern.permute.xlu0 0
      %572 = vperm.xlu0 %571, %v474
      %v573 = vpop.permute.xlu0 %572
      %576 = vset.pattern.permute.xlu0 0
      %577 = vperm.xlu0 %576, %v475
      %v578 = vpop.permute.xlu0 %577
      %581 = vset.pattern.permute.xlu0 0
      %582 = vperm.xlu0 %581, %v476
      %v583 = vpop.permute.xlu0 %582
      %586 = vset.pattern.permute.xlu0 0
      %587 = vperm.xlu0 %586, %v477
      %v588 = vpop.permute.xlu0 %587
      %591 = vset.pattern.permute.xlu0 0
      %592 = vperm.xlu0 %591, %v478
      %v593 = vpop.permute.xlu0 %592
      %596 = vset.pattern.permute.xlu0 0
      %597 = vperm.xlu0 %596, %v479
      %v598 = vpop.permute.xlu0 %597
      %601 = vset.pattern.permute.xlu0 0
      %602 = vperm.xlu0 %601, %v480
      %v603 = vpop.permute.xlu0 %602
      %606 = vset.pattern.permute.xlu0 0
      %607 = vperm.xlu0 %606, %v481
      %v608 = vpop.permute.xlu0 %607
      %611 = vset.pattern.permute.xlu0 0
      %612 = vperm.xlu0 %611, %v482
      %v613 = vpop.permute.xlu0 %612
      %616 = vset.pattern.permute.xlu0 0
      %617 = vperm.xlu0 %616, %v483
      %v618 = vpop.permute.xlu0 %617
      %621 = vset.pattern.permute.xlu0 0
      %622 = vperm.xlu0 %621, %v484
      %v623 = vpop.permute.xlu0 %622
      %626 = vset.pattern.permute.xlu0 0
      %627 = vperm.xlu0 %626, %v485
      %v628 = vpop.permute.xlu0 %627
      %631 = vset.pattern.permute.xlu0 0
      %632 = vperm.xlu0 %631, %v486
      %v633 = vpop.permute.xlu0 %632
      %636 = vset.pattern.permute.xlu0 0
      %637 = vperm.xlu0 %636, %v487
      %v638 = vpop.permute.xlu0 %637
      %641 = vset.pattern.permute.xlu0 0
      %642 = vperm.xlu0 %641, %v488
      %v643 = vpop.permute.xlu0 %642
      %646 = vset.pattern.permute.xlu0 0
      %647 = vperm.xlu0 %646, %v489
      %v648 = vpop.permute.xlu0 %647
      %651 = vset.pattern.permute.xlu0 0
      %652 = vperm.xlu0 %651, %v490
      %v653 = vpop.permute.xlu0 %652
      %656 = vset.pattern.permute.xlu0 0
      %657 = vperm.xlu0 %656, %v491
      %v658 = vpop.permute.xlu0 %657
      %661 = vset.pattern.permute.xlu0 0
      %662 = vperm.xlu0 %661, %v492
      %v663 = vpop.permute.xlu0 %662
      %666 = vset.pattern.permute.xlu0 0
      %667 = vperm.xlu0 %666, %v493
      %v668 = vpop.permute.xlu0 %667
      %671 = vset.pattern.permute.xlu0 0
      %672 = vperm.xlu0 %671, %v494
      %v673 = vpop.permute.xlu0 %672
      %676 = vset.pattern.permute.xlu0 0
      %677 = vperm.xlu0 %676, %v495
      %v678 = vpop.permute.xlu0 %677
      %681 = vset.pattern.permute.xlu0 0
      %682 = vperm.xlu0 %681, %v496
      %v683 = vpop.permute.xlu0 %682
      %686 = vset.pattern.permute.xlu0 0
      %687 = vperm.xlu0 %686, %v497
      %v688 = vpop.permute.xlu0 %687
      %691 = vset.pattern.permute.xlu0 0
      %692 = vperm.xlu0 %691, %v498
      %v693 = vpop.permute.xlu0 %692
      %696 = vset.pattern.permute.xlu0 0
      %697 = vperm.xlu0 %696, %v499
      %v698 = vpop.permute.xlu0 %697
      %701 = vset.pattern.permute.xlu0 0
      %702 = vperm.xlu0 %701, %v500
      %v703 = vpop.permute.xlu0 %702
      %706 = vset.pattern.permute.xlu0 0
      %707 = vperm.xlu0 %706, %v501
      %v708 = vpop.permute.xlu0 %707
      %711 = vset.pattern.permute.xlu0 0
      %712 = vperm.xlu0 %711, %v502
      %v713 = vpop.permute.xlu0 %712
      %716 = vset.pattern.permute.xlu0 0
      %717 = vperm.xlu0 %716, %v503
      %v718 = vpop.permute.xlu0 %717
      %721 = vset.pattern.permute.xlu0 0
      %722 = vperm.xlu0 %721, %v504
      %v723 = vpop.permute.xlu0 %722
      %726 = vset.pattern.permute.xlu0 0
      %727 = vperm.xlu0 %726, %v505
      %v728 = vpop.permute.xlu0 %727
      %731 = vset.pattern.permute.xlu0 0
      %732 = vperm.xlu0 %731, %v506
      %v733 = vpop.permute.xlu0 %732
      %736 = vset.pattern.permute.xlu0 0
      %737 = vperm.xlu0 %736, %v507
      %v738 = vpop.permute.xlu0 %737
      %741 = vset.pattern.permute.xlu0 0
      %742 = vperm.xlu0 %741, %v508
      %v743 = vpop.permute.xlu0 %742
      %746 = vset.pattern.permute.xlu0 0
      %747 = vperm.xlu0 %746, %v509
      %v748 = vpop.permute.xlu0 %747
      %v750 = vmul.f32 %v510, %v553
      %v751 = vmul.f32 %v511, %v558
      %v752 = vmul.f32 %v512, %v563
      %v753 = vmul.f32 %v513, %v568
      %v754 = vmul.f32 %v514, %v573
      %v755 = vmul.f32 %v515, %v578
      %v756 = vmul.f32 %v516, %v583
      %v757 = vmul.f32 %v517, %v588
      %v758 = vmul.f32 %v518, %v593
      %v759 = vmul.f32 %v519, %v598
      %v760 = vmul.f32 %v520, %v603
      %v761 = vmul.f32 %v521, %v608
      %v762 = vmul.f32 %v522, %v613
      %v763 = vmul.f32 %v523, %v618
      %v764 = vmul.f32 %v524, %v623
      %v765 = vmul.f32 %v525, %v628
      %v766 = vmul.f32 %v526, %v633
      %v767 = vmul.f32 %v527, %v638
      %v768 = vmul.f32 %v528, %v643
      %v769 = vmul.f32 %v529, %v648
      %v770 = vmul.f32 %v530, %v653
      %v771 = vmul.f32 %v531, %v658
      %v772 = vmul.f32 %v532, %v663
      %v773 = vmul.f32 %v533, %v668
      %v774 = vmul.f32 %v534, %v673
      %v775 = vmul.f32 %v535, %v678
      %v776 = vmul.f32 %v536, %v683
      %v777 = vmul.f32 %v537, %v688
      %v778 = vmul.f32 %v538, %v693
      %v779 = vmul.f32 %v539, %v698
      %v780 = vmul.f32 %v540, %v703
      %v781 = vmul.f32 %v541, %v708
      %v782 = vmul.f32 %v542, %v713
      %v783 = vmul.f32 %v543, %v718
      %v784 = vmul.f32 %v544, %v723
      %v785 = vmul.f32 %v545, %v728
      %v786 = vmul.f32 %v546, %v733
      %v787 = vmul.f32 %v547, %v738
      %v788 = vmul.f32 %v548, %v743
      %v789 = vmul.f32 %v549, %v748
      %790 = vst.msk [vmem:[%s174] sm:$0xff] %vm215, %v750
      %791 = vst.msk [vmem:[%s174 + $0x8] sm:$0xff] %vm215, %v751
      %792 = vst.msk [vmem:[%s174 + $0x10] sm:$0xff] %vm215, %v752
      %793 = vst.msk [vmem:[%s174 + $0x18] sm:$0xff] %vm215, %v753
      %794 = vst.msk [vmem:[%s174 + $0x20] sm:$0xff] %vm215, %v754
      %795 = vst.msk [vmem:[%s174 + $0x28] sm:$0xff] %vm215, %v755
      %796 = vst.msk [vmem:[%s174 + $0x30] sm:$0xff] %vm215, %v756
      %797 = vst.msk [vmem:[%s174 + $0x38] sm:$0xff] %vm215, %v757
      %798 = vst.msk [vmem:[%s174 + $0x40] sm:$0xff] %vm215, %v758
      %799 = vst.msk [vmem:[%s174 + $0x48] sm:$0xff] %vm215, %v759
      %800 = vst.msk [vmem:[%s174 + $0x50] sm:$0xff] %vm215, %v760
      %801 = vst.msk [vmem:[%s174 + $0x58] sm:$0xff] %vm215, %v761
      %802 = vst.msk [vmem:[%s174 + $0x60] sm:$0xff] %vm215, %v762
      %803 = vst.msk [vmem:[%s174 + $0x68] sm:$0xff] %vm215, %v763
      %804 = vst.msk [vmem:[%s174 + $0x70] sm:$0xff] %vm215, %v764
      %805 = vst.msk [vmem:[%s174 + $0x78] sm:$0xff] %vm215, %v765
      %806 = vst.msk [vmem:[%s174 + $0x80] sm:$0xff] %vm215, %v766
      %807 = vst.msk [vmem:[%s174 + $0x88] sm:$0xff] %vm215, %v767
      %808 = vst.msk [vmem:[%s174 + $0x90] sm:$0xff] %vm215, %v768
      %809 = vst.msk [vmem:[%s174 + $0x98] sm:$0xff] %vm215, %v769
      %810 = vst.msk [vmem:[%s174 + $0xa0] sm:$0xff] %vm215, %v770
      %811 = vst.msk [vmem:[%s174 + $0xa8] sm:$0xff] %vm215, %v771
      %812 = vst.msk [vmem:[%s174 + $0xb0] sm:$0xff] %vm215, %v772
      %813 = vst.msk [vmem:[%s174 + $0xb8] sm:$0xff] %vm215, %v773
      %814 = vst.msk [vmem:[%s174 + $0xc0] sm:$0xff] %vm215, %v774
      %815 = vst.msk [vmem:[%s174 + $0xc8] sm:$0xff] %vm215, %v775
      %816 = vst.msk [vmem:[%s174 + $0xd0] sm:$0xff] %vm215, %v776
      %817 = vst.msk [vmem:[%s174 + $0xd8] sm:$0xff] %vm215, %v777
      %818 = vst.msk [vmem:[%s174 + $0xe0] sm:$0xff] %vm215, %v778
      %819 = vst.msk [vmem:[%s174 + $0xe8] sm:$0xff] %vm215, %v779
      %820 = vst.msk [vmem:[%s174 + $0xf0] sm:$0xff] %vm215, %v780
      %821 = vst.msk [vmem:[%s174 + $0xf8] sm:$0xff] %vm215, %v781
      %822 = vst.msk [vmem:[%s174 + $0x100] sm:$0xff] %vm215, %v782
      %823 = vst.msk [vmem:[%s174 + $0x108] sm:$0xff] %vm215, %v783
      %824 = vst.msk [vmem:[%s174 + $0x110] sm:$0xff] %vm215, %v784
      %825 = vst.msk [vmem:[%s174 + $0x118] sm:$0xff] %vm215, %v785
      %826 = vst.msk [vmem:[%s174 + $0x120] sm:$0xff] %vm215, %v786
      %827 = vst.msk [vmem:[%s174 + $0x128] sm:$0xff] %vm215, %v787
      %828 = vst.msk [vmem:[%s174 + $0x130] sm:$0xff] %vm215, %v788
      %829 = vst.msk [vmem:[%s174 + $0x138] sm:$0xff] %vm215, %v789
      %p830 = scmp.lt.s32.totalorder %s17, 1
      %s831 = scalar_select %p830, %s17, 1
      %p832 = scmp.lt.s32.totalorder %s18, 0
      %s833 = scalar_select %p832, %s18, 0
      %s834 = smul.addr %s831, 40
      %s835 = sadd.s32 %s833, %s834
      %s836 = smul.addr %s835, 8
      %s837 = scalar_lea.vmem %s2, %s836
      // Predicated region
      $region29: #{tpu_custom_call.1} parent=27 // pred_check
        %p838 = pneg %p94
      $region30: #{tpu_custom_call.1} parent=27 // pred_check_branch
        %840 = sbr.rel (%p838) target = $region32
      $region31: #{tpu_custom_call.1} parent=27 // pred_region
        _
      $region32: #{tpu_custom_call.1} parent=27 // pred_fallthru
        _
    $region28: #{tpu_custom_call.1} parent=5 // pred_fallthru
      _
    %p841 = scmp.le.s32.totalorder 2, %s8
    // Predicated region
    $region33: #{tpu_custom_call.1} parent=5 // pred_check
      %p842 = pneg %p841
    $region34: #{tpu_custom_call.1} parent=5 // pred_check_branch
      %844 = sbr.rel (%p842) target = $region36
    $region35: #{tpu_custom_call.1} parent=5 // pred_region
      %s845 = ssub.s32 %s8, 2
      // Predicated region
      $region37: #{tpu_custom_call.1} parent=35 // pred_check
        %p846 = pneg %p100
      $region38: #{tpu_custom_call.1} parent=35 // pred_check_branch
        %848 = sbr.rel (%p846) target = $region40
      $region39: #{tpu_custom_call.1} parent=35 // pred_region
        %p849 = scmp.lt.s32.totalorder %s19, 1
        %s850 = scalar_select %p849, %s19, 1
        %p851 = scmp.lt.s32.totalorder %s20, 0
        %s852 = scalar_select %p851, %s20, 0
        %s853 = smul.addr %s850, 40
        %s854 = sadd.s32 %s852, %s853
        %s855 = smul.addr %s854, 8
        %s856 = scalar_lea.vmem %s2, %s855
      $region40: #{tpu_custom_call.1} parent=35 // pred_fallthru
        _
    $region36: #{tpu_custom_call.1} parent=5 // pred_fallthru
      _
  $region6: #{tpu_custom_call.1} parent=0 // loop_footer
    %s12 = sadd.s32 1, %s8
  $region7: #{tpu_custom_call.1} parent=0 // loop_footer_branch
    %7 = sbr.rel target = $region3
  $region8: #{tpu_custom_call.1} parent=0 // loop_exit
    _

</llo_original>
